<compile_context>
chip_gen: v6e
topology: v6e:2x2x1
jax: 0.10.0
libtpu: 0.0.40
codegen_flags: <defaults>
</compile_context>

<pallas_src>
import functools

import jax
import jax.numpy as jnp
import numpy as np
from jax.experimental import pallas as pl
from jax.experimental.pallas import tpu as pltpu

ALPHA = 0.5
BETA = 0.5
SMOOTH = 1.0

_LANE = 128
_SUB = 8


def _tversky_partials_kernel(x_ref, t_ref, out_ref, *, ch_start, l_true,
                             tile_r, grp, tiles_per_split, need_mask):
    si = pl.program_id(1)
    li = pl.program_id(2)

    # (num_rows, GRP, 128) accumulator stays resident across the (arbitrary)
    # innermost li axis; zero it on the first reduction step.
    @pl.when(li == 0)
    def _():
        out_ref[...] = jnp.zeros_like(out_ref)

    x = x_ref[...].astype(jnp.float32)   # (C, TILE_R, 128); C on leading axis
    t = t_ref[...].astype(jnp.float32)   # (C, TILE_R, 128)

    # Softmax over the channel axis = reduction over a leading (non-minor)
    # axis: unrolled vreg-to-vreg max/add on the VPU, no XLU traffic.
    m = jnp.max(x, axis=0)                               # (TILE_R, 128)
    e = jnp.exp(x - m[None, :, :])                       # (C, TILE_R, 128)
    denom = jnp.sum(e, axis=0)                           # (TILE_R, 128)
    inv = pl.reciprocal(denom, approx=False)             # exact: 1e-5 parity

    if ch_start:
        e_sel = e[ch_start:]
        t_sel = t[ch_start:]
    else:
        e_sel, t_sel = e, t

    tp = jnp.sum(e_sel * t_sel, axis=0) * inv            # sum_c p_c * t_c
    st = jnp.sum(t_sel, axis=0)                          # sum_c t_c
    vecs = [tp, st]
    if ch_start:
        # sum_p over kept channels is derived as count - sum(p0) in wrapper.
        vecs.append(e[0] * inv)

    if need_mask:
        # Mask logically-invalid positions (block tail beyond H*W); garbage
        # from partial edge DMAs is confined to these columns.
        row = jax.lax.broadcasted_iota(jnp.int32, (tile_r, _LANE), 0)
        lane = jax.lax.broadcasted_iota(jnp.int32, (tile_r, _LANE), 1)
        base = (si * tiles_per_split + li) * tile_r
        valid = (base + row) * _LANE + lane < l_true
        vecs = [jnp.where(valid, v, 0.0) for v in vecs]

    # Fold TILE_R rows into GRP-row groups via a leading-axis (VALU) reduce,
    # then ONE fused accumulator update (no per-row masked RMWs).
    folded = [v.reshape(tile_r // grp, grp, _LANE).sum(axis=0) for v in vecs]
    out_ref[...] += jnp.stack(folded, axis=0)            # (num_rows, GRP, 128)


def _choose_tile_r(r, c, block_rows=None):
    """Rows per block: ~2 MiB of f32 working set per input block."""
    if block_rows is None:
        target = 2 * 1024 * 1024
        block_rows = max(16, (target // (c * _LANE * 4)) // 16 * 16)
    if block_rows >= r:
        return r                       # full-extent block (always legal)
    return max(_SUB, block_rows // _SUB * _SUB)


def tversky_loss_v2(inputs, targets, *, include_background=True,
                    alpha=ALPHA, beta=BETA, smooth=SMOOTH, block_rows=None):
    """Pallas implementation of TverskyLossV2.forward (NCHW inputs/targets)."""
    n, c, h, w = inputs.shape
    l = h * w

    # Free reshape NCHW -> (N, C, R, 128).  Only pads (one extra HBM pass) in
    # the rare case where H*W is not a multiple of 128.
    l_pad = -(-l // _LANE) * _LANE
    x = inputs.reshape(n, c, l)
    t = targets.reshape(n, c, l)
    if l_pad != l:
        x = jnp.pad(x, ((0, 0), (0, 0), (0, l_pad - l)))
        t = jnp.pad(t, ((0, 0), (0, 0), (0, l_pad - l)))
    r = l_pad // _LANE
    x = x.reshape(n, c, r, _LANE)
    t = t.reshape(n, c, r, _LANE)

    tile_r = _choose_tile_r(r, c, block_rows)
    grp = _SUB if tile_r % _SUB == 0 else tile_r
    num_tiles = -(-r // tile_r)

    # 2-way split of the spatial tiles over a second parallel axis so a v7x
    # megacore is busy even at N == 1; only when the split is exact (no wasted
    # DMAs). Harmless on single-TC chips.
    n_splits = 2 if (num_tiles >= 2 and num_tiles % 2 == 0) else 1
    tiles_per_split = num_tiles // n_splits

    ch_start = 0 if include_background else 1
    num_rows = 3 if ch_start else 2
    need_mask = (num_tiles * tile_r * _LANE) != l

    kernel = functools.partial(
        _tversky_partials_kernel, ch_start=ch_start, l_true=l, tile_r=tile_r,
        grp=grp, tiles_per_split=tiles_per_split, need_mask=need_mask)

    in_bytes = n * c * l_pad * (jnp.dtype(inputs.dtype).itemsize
                                + jnp.dtype(targets.dtype).itemsize)
    out_bytes = n * n_splits * num_rows * grp * _LANE * 4
    cost = pl.CostEstimate(flops=8 * n * c * l_pad,
                           transcendentals=n * c * l_pad,
                           bytes_accessed=in_bytes + out_bytes)

    partials = pl.pallas_call(
        kernel,
        out_shape=jax.ShapeDtypeStruct((n, n_splits, num_rows, grp, _LANE),
                                       jnp.float32),
        grid=(n, n_splits, tiles_per_split),
        in_specs=[
            pl.BlockSpec((pl.Squeezed(), c, tile_r, _LANE),
                         lambda ni, si, li: (ni, 0, si * tiles_per_split + li, 0)),
            pl.BlockSpec((pl.Squeezed(), c, tile_r, _LANE),
                         lambda ni, si, li: (ni, 0, si * tiles_per_split + li, 0)),
        ],
        out_specs=pl.BlockSpec(
            (pl.Squeezed(), pl.Squeezed(), num_rows, grp, _LANE),
            lambda ni, si, li: (ni, si, 0, 0, 0)),
        compiler_params=pltpu.CompilerParams(
            dimension_semantics=("parallel", "parallel", "arbitrary"),
            vmem_limit_bytes=32 * 1024 * 1024),
        cost_estimate=cost,
    )(x, t)

    # Tiny epilogue on the (N, splits, rows, GRP, 128) partial sums.
    sums = jnp.sum(partials, axis=(0, 1, 3, 4))          # (num_rows,)
    tp, st = sums[0], sums[1]
    count = jnp.float32(n * l)
    # Softmax rows sum to 1, so sum(p) over the kept channels is analytic.
    sum_p = count if ch_start == 0 else count - sums[2]
    fp = sum_p - tp                                       # sum((1 - t) * p)
    fn = st - tp                                          # sum(t * (1 - p))
    tversky = (tp + smooth) / (tp + alpha * fp + beta * fn + smooth)
    return (1.0 - tversky).astype(jnp.float32)


def _reference_loss(inputs, targets, *, include_background=True,
                    alpha=ALPHA, beta=BETA, smooth=SMOOTH):
    p = jax.nn.softmax(inputs.astype(jnp.float32), axis=1)
    t = targets.astype(jnp.float32)
    if not include_background:
        p = p[:, 1:]
        t = t[:, 1:]
    p = p.reshape(-1)
    t = t.reshape(-1)
    tp = jnp.sum(p * t)
    fp = jnp.sum((1.0 - t) * p)
    fn = jnp.sum(t * (1.0 - p))
    return 1.0 - (tp + smooth) / (tp + alpha * fp + beta * fn + smooth)


if __name__ == "__main__":
    key = jax.random.PRNGKey(0)

    # (shape, include_background, block_rows override for multi-tile testing)
    configs = [
        ((2, 4, 16, 16), True, None),    # canonical small case
        ((2, 4, 16, 16), False, None),   # background excluded (p0 path)
        ((1, 4, 64, 64), True, 8),       # multi-tile + 2-way core split + accum
        ((1, 3, 48, 40), False, 8),      # ragged tail mask + odd C + p0 path
    ]

    for idx, (shape, include_bg, brows) in enumerate(configs):
        n_, c_, h_, w_ = shape
        key, k_in, k_lbl = jax.random.split(key, 3)
        logits = jax.random.normal(k_in, shape, dtype=jnp.float32)
        labels = jax.random.randint(k_lbl, (n_, h_, w_), 0, c_)
        onehot = jax.nn.one_hot(labels, c_, axis=1, dtype=jnp.float32)

        loss = jax.block_until_ready(
            tversky_loss_v2(logits, onehot, include_background=include_bg,
                            block_rows=brows))
        ref = jax.block_until_ready(
            _reference_loss(logits, onehot, include_background=include_bg))
        np.testing.assert_allclose(np.asarray(loss), np.asarray(ref),
                                   rtol=1e-5, atol=1e-5)

    print("KERNEL_OK")
</pallas_src>

<mosaic_0001>
module attributes {stable_mosaic.version = 11 : i64} {
  func.func @_tversky_partials_kernel(%arg0: i32, %arg1: i32, %arg2: i32, %arg3: memref<1x4x2x128xf32, #tpu.memory_space<vmem>>, %arg4: memref<1x4x2x128xf32, #tpu.memory_space<vmem>>, %arg5: memref<1x1x2x2x128xf32, #tpu.memory_space<vmem>>) attributes {dimension_semantics = [#tpu.dimension_semantics<parallel>, #tpu.dimension_semantics<parallel>, #tpu.dimension_semantics<arbitrary>], iteration_bounds = array<i64: 2, 1, 1>, scalar_prefetch = 0 : i64, scratch_operands = 0 : i64, tpu.core_type = #tpu.core_type<tc>, window_params = [{transform_indices = @transform_0, window_bounds = array<i64: 1, 4, 2, 128>}, {transform_indices = @transform_1, window_bounds = array<i64: 1, 4, 2, 128>}, {transform_indices = @transform_2, window_bounds = array<i64: 1, 1, 2, 2, 128>}]} {
    %c0_i32 = arith.constant 0 : i32
    %0 = arith.cmpi eq, %arg2, %c0_i32 : i32
    %1 = arith.extui %0 : i1 to i32
    %c0_i32_0 = arith.constant 0 : i32
    %2 = arith.cmpi ne, %1, %c0_i32_0 : i32
    scf.if %2 {
      %cst_23 = arith.constant 0.000000e+00 : f32
      %31 = vector.broadcast %cst_23 : f32 to vector<2x2x128xf32>
      %c0_24 = arith.constant 0 : index
      %c0_25 = arith.constant 0 : index
      %c0_26 = arith.constant 0 : index
      %c0_27 = arith.constant 0 : index
      %c0_28 = arith.constant 0 : index
      %32 = vector.load %arg5[%c0_24, %c0_25, %c0_26, %c0_27, %c0_28] : memref<1x1x2x2x128xf32, #tpu.memory_space<vmem>>, vector<1x1x2x2x128xf32>
      %33 = vector.shape_cast %32 : vector<1x1x2x2x128xf32> to vector<2x2x128xf32>
      %34 = vector.shape_cast %31 : vector<2x2x128xf32> to vector<1x1x2x2x128xf32>
      tpu.vector_store %arg5[%c0_24, %c0_25, %c0_26, %c0_27, %c0_28], %34 {strides = array<i32>} : memref<1x1x2x2x128xf32, #tpu.memory_space<vmem>>, vector<1x1x2x2x128xf32>,
    } else {
    }
    %c0 = arith.constant 0 : index
    %c0_1 = arith.constant 0 : index
    %c0_2 = arith.constant 0 : index
    %c0_3 = arith.constant 0 : index
    %3 = vector.load %arg3[%c0, %c0_1, %c0_2, %c0_3] : memref<1x4x2x128xf32, #tpu.memory_space<vmem>>, vector<1x4x2x128xf32>
    %4 = vector.shape_cast %3 : vector<1x4x2x128xf32> to vector<4x2x128xf32>
    %c0_4 = arith.constant 0 : index
    %c0_5 = arith.constant 0 : index
    %c0_6 = arith.constant 0 : index
    %c0_7 = arith.constant 0 : index
    %5 = vector.load %arg4[%c0_4, %c0_5, %c0_6, %c0_7] : memref<1x4x2x128xf32, #tpu.memory_space<vmem>>, vector<1x4x2x128xf32>
    %6 = vector.shape_cast %5 : vector<1x4x2x128xf32> to vector<4x2x128xf32>
    %cst = arith.constant dense<0xFF800000> : vector<2x128xf32>
    %7 = vector.multi_reduction <maximumf>, %4, %cst [0] : vector<4x2x128xf32> to vector<2x128xf32>
    %8 = vector.shape_cast %7 : vector<2x128xf32> to vector<1x2x128xf32>
    %9 = vector.broadcast %8 : vector<1x2x128xf32> to vector<4x2x128xf32>
    %10 = arith.subf %4, %9 : vector<4x2x128xf32>
    %11 = math.exp %10 : vector<4x2x128xf32>
    %cst_8 = arith.constant dense<0.000000e+00> : vector<2x128xf32>
    %12 = vector.multi_reduction <add>, %11, %cst_8 [0] : vector<4x2x128xf32> to vector<2x128xf32>
    %13 = tpu.reciprocal %12 : vector<2x128xf32> -> vector<2x128xf32>
    %14 = arith.mulf %11, %6 : vector<4x2x128xf32>
    %cst_9 = arith.constant dense<0.000000e+00> : vector<2x128xf32>
    %15 = vector.multi_reduction <add>, %14, %cst_9 [0] : vector<4x2x128xf32> to vector<2x128xf32>
    %16 = arith.mulf %15, %13 : vector<2x128xf32>
    %cst_10 = arith.constant dense<0.000000e+00> : vector<2x128xf32>
    %17 = vector.multi_reduction <add>, %6, %cst_10 [0] : vector<4x2x128xf32> to vector<2x128xf32>
    %18 = vector.shape_cast %16 : vector<2x128xf32> to vector<1x2x128xf32>
    %cst_11 = arith.constant dense<0.000000e+00> : vector<2x128xf32>
    %19 = vector.multi_reduction <add>, %18, %cst_11 [0] : vector<1x2x128xf32> to vector<2x128xf32>
    %20 = vector.shape_cast %17 : vector<2x128xf32> to vector<1x2x128xf32>
    %cst_12 = arith.constant dense<0.000000e+00> : vector<2x128xf32>
    %21 = vector.multi_reduction <add>, %20, %cst_12 [0] : vector<1x2x128xf32> to vector<2x128xf32>
    %c0_13 = arith.constant 0 : index
    %c0_14 = arith.constant 0 : index
    %c0_15 = arith.constant 0 : index
    %c0_16 = arith.constant 0 : index
    %c0_17 = arith.constant 0 : index
    %22 = vector.load %arg5[%c0_13, %c0_14, %c0_15, %c0_16, %c0_17] : memref<1x1x2x2x128xf32, #tpu.memory_space<vmem>>, vector<1x1x2x2x128xf32>
    %23 = vector.shape_cast %22 : vector<1x1x2x2x128xf32> to vector<2x2x128xf32>
    %24 = vector.shape_cast %19 : vector<2x128xf32> to vector<1x2x128xf32>
    %25 = vector.shape_cast %21 : vector<2x128xf32> to vector<1x2x128xf32>
    %26 = tpu.concatenate %24, %25 in 0 : vector<1x2x128xf32>, vector<1x2x128xf32> -> vector<2x2x128xf32>
    %27 = arith.addf %23, %26 : vector<2x2x128xf32>
    %c0_18 = arith.constant 0 : index
    %c0_19 = arith.constant 0 : index
    %c0_20 = arith.constant 0 : index
    %c0_21 = arith.constant 0 : index
    %c0_22 = arith.constant 0 : index
    %28 = vector.load %arg5[%c0_18, %c0_19, %c0_20, %c0_21, %c0_22] : memref<1x1x2x2x128xf32, #tpu.memory_space<vmem>>, vector<1x1x2x2x128xf32>
    %29 = vector.shape_cast %28 : vector<1x1x2x2x128xf32> to vector<2x2x128xf32>
    %30 = vector.shape_cast %27 : vector<2x2x128xf32> to vector<1x1x2x2x128xf32>
    tpu.vector_store %arg5[%c0_18, %c0_19, %c0_20, %c0_21, %c0_22], %30 {strides = array<i32>} : memref<1x1x2x2x128xf32, #tpu.memory_space<vmem>>, vector<1x1x2x2x128xf32>,
    return
  }
  func.func @transform_0(%arg0: i32, %arg1: i32, %arg2: i32) -> (i32, i32, i32, i32) {
    %c1_i32 = arith.constant 1 : i32
    %0 = arith.muli %arg1, %c1_i32 : i32
    %1 = arith.addi %0, %arg2 : i32
    %c0_i32 = arith.constant 0 : i32
    %c0_i32_0 = arith.constant 0 : i32
    %c0_i32_1 = arith.constant 0 : i32
    return %arg0, %c0_i32, %1, %c0_i32_0 : i32, i32, i32, i32
  }
  func.func @transform_1(%arg0: i32, %arg1: i32, %arg2: i32) -> (i32, i32, i32, i32) {
    %c1_i32 = arith.constant 1 : i32
    %0 = arith.muli %arg1, %c1_i32 : i32
    %1 = arith.addi %0, %arg2 : i32
    %c0_i32 = arith.constant 0 : i32
    %c0_i32_0 = arith.constant 0 : i32
    %c0_i32_1 = arith.constant 0 : i32
    return %arg0, %c0_i32, %1, %c0_i32_0 : i32, i32, i32, i32
  }
  func.func @transform_2(%arg0: i32, %arg1: i32, %arg2: i32) -> (i32, i32, i32, i32, i32) {
    %c0_i32 = arith.constant 0 : i32
    %c0_i32_0 = arith.constant 0 : i32
    %c0_i32_1 = arith.constant 0 : i32
    %c0_i32_2 = arith.constant 0 : i32
    return %arg0, %arg1, %c0_i32, %c0_i32_0, %c0_i32_1 : i32, i32, i32, i32, i32
  }
}

</mosaic_0001>

<llo_original>
// kernel: tpu_custom_call.1
$region0: #{tpu_custom_call.1}
  #allocation0 [shape = 'u32[]', space=smem, size = 0x4, offset = 0x4, fixed_abs, tag = 'smem constant byte address 0x4 - core index']
  #allocation1 [shape = 'u32[144,128]{1,0:T(1,128)}', space=vmem, size = 0x12000, scoped, tag = 'internal scratch']
  %s0 = inlined_call_operand.hbm [shape: f32[2,4,2,128], index: 0, kind: input, shape index: {}]
  %s1 = inlined_call_operand.hbm [shape: f32[2,4,2,128], index: 1, kind: input, shape index: {}]
  %s2 = inlined_call_operand.hbm [shape: f32[2,1,2,2,128], index: 2, kind: output, shape index: {}]
  %s3 = sld [smem:[#allocation0]]
  $region53: #{tpu_custom_call.1} parent=0
    _
  %s5 = ssub.s32 1, %s3
  %s6 = scalar_select 0, %s5, %s3
  $region1: #{tpu_custom_call.1} parent=0
    #allocation2 [shape = 'u8[8192]{0}', space=vmem, size = 0x2000, scoped, tag = 'input window, operand 0']
    #allocation3 [shape = 's32[2]{0}', space=sflag, size = 0x8, scoped, tag = 'scoped memory for tpu_custom_call.1']
    #allocation4 [shape = 's32[2]{0}', space=sflag, size = 0x8, scoped, tag = 'scoped memory for tpu_custom_call.1']
    #allocation5 [shape = 'u8[8192]{0}', space=vmem, size = 0x2000, scoped, tag = 'input window, operand 1']
    #allocation6 [shape = 's32[2]{0}', space=sflag, size = 0x8, scoped, tag = 'scoped memory for tpu_custom_call.1']
    #allocation7 [shape = 'u8[4096]{0}', space=vmem, size = 0x1000, scoped, tag = 'output window, operand 0']
    %7 = vsyncpa [#allocation3], 0
    %s8 = scalar_lea.sflag [#allocation3], 1
    %9 = vsyncpa %s8, 0
    %10 = vsyncpa [#allocation6], 0
    %s11 = scalar_lea.sflag [#allocation6], 1
    %12 = vsyncpa %s11, 0
    %13 = vsyncpa [#allocation4], 0
    %s14 = scalar_lea.sflag [#allocation4], 1
    %15 = vsyncpa %s14, 0
    loop: start=0, step=1, limit=4
    $region2: #{tpu_custom_call.1} parent=1 // loop_pre_header
      _
    $region3: #{tpu_custom_call.1} parent=1 // loop_header
      %s17 = sphi 0, %s21
      %p18 = scmp.ge.s32.totalorder %s17, 4
      %s24 = sphi 0, %s43
      %s25 = sphi 0, %s39
      %s26 = sphi 0, %s35
      %s27 = sphi 0, %s24
      %s28 = sphi 0, %s25
      %s29 = sphi 0, %s26
      %s30 = sphi 0, %s27
      %s31 = sphi 0, %s28
      %s32 = sphi 0, %s29
      %s50 = sphi 0, %s52
      %s53 = sphi 0, %s50
      %s54 = sphi 0, %s53
      %s70 = sphi 0, %s54
      %s80 = sphi 0, %s82
      %s83 = sphi 0, %s80
      %s84 = sphi 0, %s83
      %s100 = sphi 0, %s84
      %s108 = sphi 0, %s110
      %s111 = sphi 0, %s108
      %s112 = sphi 0, %s111
      %s128 = sphi 0, %s112
    $region4: #{tpu_custom_call.1} parent=1 // loop_header_branch
      %20 = sbr.rel (%p18) target = $region8
    $region5: #{tpu_custom_call.1} parent=1 // loop_body
      %s22 = ssub.s32 %s17, 1
      %s23 = ssub.s32 %s17, 2
      %s33 = sadd.s32 1, %s26
      %p34 = scmp.ge.s32.totalorder %s33, 1
      %s35 = scalar_select %p34, 0, %s33
      %s36 = sadd.s32 1, %s25
      %s37 = scalar_select %p34, %s36, %s25
      %p38 = scmp.ge.s32.totalorder %s37, 1
      %s39 = scalar_select %p38, 0, %s37
      %s40 = sadd.s32 1, %s24
      %s41 = scalar_select %p38, %s40, %s24
      %p42 = scmp.ge.s32.totalorder %s41, 2
      %s43 = scalar_select %p42, 0, %s41
      %s44 = sadd.s32 %s25, %s26
      %s45 = sadd.s32 %s39, %s35
      %s46 = ssub.s32 %s24, %s43
      %s47 = ssub.s32 %s44, %s45
      %s48 = sor.u32 %s46, %s47
      %p49 = scmp.eq.s32.totalorder %s48, 0
      %s51 = sadd.s32 %s50, 1
      %s52 = scalar_select %p49, %s50, %s51
      %p55 = pneg %p49
      %p56 = scmp.eq.s32.totalorder %s17, 1
      %p57 = por %p55, %p56
      %p58 = scmp.ne.s32.totalorder %s50, %s53
      %p59 = scmp.eq.s32.totalorder %s17, 0
      %p60 = por %p58, %p59
      %p61 = scmp.ne.s32.totalorder %s50, %s53
      %p62 = scmp.eq.s32.totalorder %s22, 1
      %p63 = por %p61, %p62
      %p64 = scmp.ne.s32.totalorder %s53, %s54
      %p65 = scmp.eq.s32.totalorder %s22, 0
      %p66 = por %p64, %p65
      %p67 = scmp.ne.s32.totalorder %s53, %s54
      %p68 = scmp.eq.s32.totalorder %s23, 1
      %p69 = por %p67, %p68
      %p71 = scmp.ne.s32.totalorder %s54, %s70
      %p72 = scmp.eq.s32.totalorder %s23, 0
      %p73 = por %p71, %p72
      %s74 = sadd.s32 %s25, %s26
      %s75 = sadd.s32 %s39, %s35
      %s76 = ssub.s32 %s24, %s43
      %s77 = ssub.s32 %s74, %s75
      %s78 = sor.u32 %s76, %s77
      %p79 = scmp.eq.s32.totalorder %s78, 0
      %s81 = sadd.s32 %s80, 1
      %s82 = scalar_select %p79, %s80, %s81
      %p85 = pneg %p79
      %p86 = scmp.eq.s32.totalorder %s17, 1
      %p87 = por %p85, %p86
      %p88 = scmp.ne.s32.totalorder %s80, %s83
      %p89 = scmp.eq.s32.totalorder %s17, 0
      %p90 = por %p88, %p89
      %p91 = scmp.ne.s32.totalorder %s80, %s83
      %p92 = scmp.eq.s32.totalorder %s22, 1
      %p93 = por %p91, %p92
      %p94 = scmp.ne.s32.totalorder %s83, %s84
      %p95 = scmp.eq.s32.totalorder %s22, 0
      %p96 = por %p94, %p95
      %p97 = scmp.ne.s32.totalorder %s83, %s84
      %p98 = scmp.eq.s32.totalorder %s23, 1
      %p99 = por %p97, %p98
      %p101 = scmp.ne.s32.totalorder %s84, %s100
      %p102 = scmp.eq.s32.totalorder %s23, 0
      %p103 = por %p101, %p102
      %s104 = ssub.s32 %s24, %s43
      %s105 = ssub.s32 %s25, %s39
      %s106 = sor.u32 %s104, %s105
      %p107 = scmp.eq.s32.totalorder %s106, 0
      %s109 = sadd.s32 %s108, 1
      %s110 = scalar_select %p107, %s108, %s109
      %p113 = pneg %p107
      %p114 = scmp.eq.s32.totalorder %s17, 1
      %p115 = por %p113, %p114
      %p116 = scmp.ne.s32.totalorder %s108, %s111
      %p117 = scmp.eq.s32.totalorder %s17, 0
      %p118 = por %p116, %p117
      %p119 = scmp.ne.s32.totalorder %s108, %s111
      %p120 = scmp.eq.s32.totalorder %s22, 1
      %p121 = por %p119, %p120
      %p122 = scmp.ne.s32.totalorder %s111, %s112
      %p123 = scmp.eq.s32.totalorder %s22, 0
      %p124 = por %p122, %p123
      %p125 = scmp.ne.s32.totalorder %s111, %s112
      %p126 = scmp.eq.s32.totalorder %s23, 1
      %p127 = por %p125, %p126
      %p129 = scmp.ne.s32.totalorder %s112, %s128
      %p130 = scmp.eq.s32.totalorder %s23, 0
      %p131 = por %p129, %p130
      %p132 = scmp.le.s32.totalorder 1, %s17
      %p133 = scmp.lt.s32.totalorder %s17, 3
      %p134 = pnand %p132, %p133
      %p135 = pneg %p134
      // Predicated region
      $region9: #{tpu_custom_call.1} parent=5 // pred_check
        _
      $region10: #{tpu_custom_call.1} parent=5 // pred_check_branch
        %137 = sbr.rel (%p134) target = $region12
      $region11: #{tpu_custom_call.1} parent=5 // pred_region
        %s138 = ssub.s32 %s17, 1
      $region12: #{tpu_custom_call.1} parent=5 // pred_fallthru
        _
      %p139 = scmp.lt.s32.totalorder %s17, 2
      // Predicated region
      $region13: #{tpu_custom_call.1} parent=5 // pred_check
        %p140 = pneg %p139
      $region14: #{tpu_custom_call.1} parent=5 // pred_check_branch
        %142 = sbr.rel (%p140) target = $region16
      $region15: #{tpu_custom_call.1} parent=5 // pred_region
        // Predicated region
        $region17: #{tpu_custom_call.1} parent=15 // pred_check
          %p143 = pneg %p60
        $region18: #{tpu_custom_call.1} parent=15 // pred_check_branch
          %145 = sbr.rel (%p143) target = $region20
        $region19: #{tpu_custom_call.1} parent=15 // pred_region
          %s146 = sand.u32 %s50, 1
          %s147 = scalar_lea.sflag [#allocation3], %s146
          %s148 = sand.u32 %s50, 1
          %s149 = smul.addr %s148, 8
          %s150 = scalar_lea.vmem [#allocation2], %s149
          %s151 = sadd.s32 %s25, %s26
          %s153 = ssub.s32 128, 128
          %154 = vsyncadd %s147, %s153
          %s155 = smul.addr %s24, 4
          %s156 = sadd.s32 %s151, %s155
          %s157 = smul.addr %s156, 32
          %s158 = scalar_lea.hbm %s0, %s157
          %s159 = sshll.u32 %s150, 4
          %s160 = int_to_ptr.vmem [resolvable:$true] %s159
          %165 = dma.hbm_to_vmem [thread:$0]  %s158, 128, %s160, %s147, 32, 32, 2
        $region20: #{tpu_custom_call.1} parent=15 // pred_fallthru
          _
        // Predicated region
        $region21: #{tpu_custom_call.1} parent=15 // pred_check
          %p166 = pneg %p90
        $region22: #{tpu_custom_call.1} parent=15 // pred_check_branch
          %168 = sbr.rel (%p166) target = $region24
        $region23: #{tpu_custom_call.1} parent=15 // pred_region
          %s169 = sand.u32 %s80, 1
          %s170 = scalar_lea.sflag [#allocation6], %s169
          %s171 = sand.u32 %s80, 1
          %s172 = smul.addr %s171, 8
          %s173 = scalar_lea.vmem [#allocation5], %s172
          %s174 = sadd.s32 %s25, %s26
          %s176 = ssub.s32 128, 128
          %177 = vsyncadd %s170, %s176
          %s178 = smul.addr %s24, 4
          %s179 = sadd.s32 %s174, %s178
          %s180 = smul.addr %s179, 32
          %s181 = scalar_lea.hbm %s1, %s180
          %s182 = sshll.u32 %s173, 4
          %s183 = int_to_ptr.vmem [resolvable:$true] %s182
          %188 = dma.hbm_to_vmem [thread:$0]  %s181, 128, %s183, %s170, 32, 32, 2
        $region24: #{tpu_custom_call.1} parent=15 // pred_fallthru
          _
      $region16: #{tpu_custom_call.1} parent=5 // pred_fallthru
        _
      %p189 = scmp.le.s32.totalorder 1, %s17
      %p190 = scmp.lt.s32.totalorder %s17, 3
      %p191 = pnand %p189, %p190
      %p192 = pneg %p191
      // Predicated region
      $region25: #{tpu_custom_call.1} parent=5 // pred_check
        _
      $region26: #{tpu_custom_call.1} parent=5 // pred_check_branch
        %194 = sbr.rel (%p191) target = $region28
      $region27: #{tpu_custom_call.1} parent=5 // pred_region
        %s195 = ssub.s32 %s17, 1
        %s196 = sand.u32 %s53, 1
        %s197 = scalar_lea.sflag [#allocation3], %s196
        %s198 = sand.u32 %s53, 1
        %s199 = smul.addr %s198, 8
        %s200 = scalar_lea.vmem [#allocation2], %s199
        // Predicated region
        $region29: #{tpu_custom_call.1} parent=27 // pred_check
          %p201 = pneg %p66
        $region30: #{tpu_custom_call.1} parent=27 // pred_check_branch
          %203 = sbr.rel (%p201) target = $region32
        $region31: #{tpu_custom_call.1} parent=27 // pred_region
          %204 = dma.done %s197, 128
        $region32: #{tpu_custom_call.1} parent=27 // pred_fallthru
          _
        %s205 = sand.u32 %s83, 1
        %s206 = scalar_lea.sflag [#allocation6], %s205
        %s207 = sand.u32 %s83, 1
        %s208 = smul.addr %s207, 8
        %s209 = scalar_lea.vmem [#allocation5], %s208
        // Predicated region
        $region33: #{tpu_custom_call.1} parent=27 // pred_check
          %p210 = pneg %p96
        $region34: #{tpu_custom_call.1} parent=27 // pred_check_branch
          %212 = sbr.rel (%p210) target = $region36
        $region35: #{tpu_custom_call.1} parent=27 // pred_region
          %213 = dma.done %s206, 128
        $region36: #{tpu_custom_call.1} parent=27 // pred_fallthru
          _
        %s214 = sand.u32 %s53, 1
        %s215 = scalar_lea.sflag [#allocation3], %s214
        %s216 = sand.u32 %s53, 1
        %s217 = smul.addr %s216, 8
        %s218 = scalar_lea.vmem [#allocation2], %s217
        %p219 = pneg %p66
        %p220 = pneg %p63
        %s221 = sand.u32 %s83, 1
        %s222 = scalar_lea.sflag [#allocation6], %s221
        %s223 = sand.u32 %s83, 1
        %s224 = smul.addr %s223, 8
        %s225 = scalar_lea.vmem [#allocation5], %s224
        %p226 = pneg %p96
        %p227 = pneg %p93
        %p228 = pneg %p124
        %p229 = pneg %p121
        %s230 = sand.u32 %s111, 1
        %s231 = scalar_lea.sflag [#allocation4], %s230
        %s232 = sand.u32 %s111, 1
        %s233 = smul.addr %s232, 4
        %s234 = scalar_lea.vmem [#allocation7], %s233
        %s235 = sadd.s32 %s28, %s29
        %s236 = sadd.s32 %s28, %s29
        %p237 = scmp.eq.s32.totalorder %s29, 0
        // Predicated region
        $region37: #{tpu_custom_call.1} parent=27 // pred_check
          %p238 = pneg %p237
        $region38: #{tpu_custom_call.1} parent=27 // pred_check_branch
          %240 = sbr.rel (%p238) target = $region40
        $region39: #{tpu_custom_call.1} parent=27 // pred_region
          %241 = vst [vmem:[%s234] sm:$0x3] 0.0
          %242 = vst [vmem:[%s234 + $0x2] sm:$0x3] 0.0
        $region40: #{tpu_custom_call.1} parent=27 // pred_fallthru
          _
        %v243 = vld [vmem:[%s200] sm:$0x3]
        %v244 = vld [vmem:[%s200 + $0x2] sm:$0x3]
        %v245 = vld [vmem:[%s200 + $0x4] sm:$0x3]
        %v246 = vld [vmem:[%s200 + $0x6] sm:$0x3]
        %v247 = vld [vmem:[%s209] sm:$0x3]
        %v248 = vld [vmem:[%s209 + $0x2] sm:$0x3]
        %v249 = vld [vmem:[%s209 + $0x4] sm:$0x3]
        %v250 = vld [vmem:[%s209 + $0x6] sm:$0x3]
        %vm251 = vcmask 1041408
        %v252 = vsel %vm251, %v243, -inf
        %v253 = vsel %vm251, %v244, -inf
        %v254 = vsel %vm251, %v245, -inf
        %v255 = vsel %vm251, %v246, -inf
        %v256 = vmax.f32 %v252, %v253
        %v257 = vmax.f32 %v254, %v255
        %v258 = vmax.f32 %v256, %v257
        %v259 = vsub.f32 %v243, %v258
        %v260 = vsub.f32 %v244, %v258
        %v261 = vsub.f32 %v245, %v258
        %v262 = vsub.f32 %v246, %v258
        %v263 = vmul.f32 %v259, 1.442695
        %v264 = vpow.pop %v263
        %v265 = vmul.f32 %v260, 1.442695
        %v266 = vpow.pop %v265
        %v267 = vmul.f32 %v261, 1.442695
        %v268 = vpow.pop %v267
        %v269 = vmul.f32 %v262, 1.442695
        %v270 = vpow.pop %v269
        %v271 = vsel %vm251, %v264, 0.0
        %v272 = vsel %vm251, %v266, 0.0
        %v273 = vadd.f32 %v271, %v272
        %v274 = vsel %vm251, %v268, 0.0
        %v275 = vadd.f32 %v273, %v274
        %v276 = vsel %vm251, %v270, 0.0
        %v277 = vadd.f32 %v275, %v276
        %v278 = vrcp.pop %v277
        %v279 = vmul.f32 %v264, %v247
        %v280 = vmul.f32 %v266, %v248
        %v281 = vmul.f32 %v268, %v249
        %v282 = vmul.f32 %v270, %v250
        %v283 = vsel %vm251, %v279, 0.0
        %v284 = vsel %vm251, %v280, 0.0
        %v285 = vadd.f32 %v283, %v284
        %v286 = vsel %vm251, %v281, 0.0
        %v287 = vadd.f32 %v285, %v286
        %v288 = vsel %vm251, %v282, 0.0
        %v289 = vadd.f32 %v287, %v288
        %v290 = vmul.f32 %v289, %v278
        %v291 = vsel %vm251, %v247, 0.0
        %v292 = vsel %vm251, %v248, 0.0
        %v293 = vadd.f32 %v291, %v292
        %v294 = vsel %vm251, %v249, 0.0
        %v295 = vadd.f32 %v293, %v294
        %v296 = vsel %vm251, %v250, 0.0
        %v297 = vadd.f32 %v295, %v296
        %v298 = vadd.f32 %v290, 0.0
        %v299 = vadd.f32 %v297, 0.0
        %v300 = vld [vmem:[%s234] sm:$0x3]
        %v301 = vld [vmem:[%s234 + $0x2] sm:$0x3]
        %v302 = vadd.f32 %v300, %v298
        %v303 = vadd.f32 %v301, %v299
        %304 = vst [vmem:[%s234] sm:$0x3] %v302
        %305 = vst [vmem:[%s234 + $0x2] sm:$0x3] %v303
        %s306 = sand.u32 %s111, 1
        %s307 = scalar_lea.sflag [#allocation4], %s306
        %s308 = sand.u32 %s111, 1
        %s309 = smul.addr %s308, 4
        %s310 = scalar_lea.vmem [#allocation7], %s309
        // Predicated region
        $region41: #{tpu_custom_call.1} parent=27 // pred_check
          %p311 = pneg %p121
        $region42: #{tpu_custom_call.1} parent=27 // pred_check_branch
          %313 = sbr.rel (%p311) target = $region44
        $region43: #{tpu_custom_call.1} parent=27 // pred_region
          %s315 = ssub.s32 64, 64
          %316 = vsyncadd %s307, %s315
          %s317 = smul.addr %s28, 2
          %s318 = smul.addr %s27, 2
          %s319 = sadd.s32 %s317, %s318
          %s320 = smul.addr %s319, 32
          %s321 = scalar_lea.hbm %s2, %s320
          %s322 = sshll.u32 %s310, 4
          %s323 = int_to_ptr.vmem [resolvable:$true] %s322
          %328 = dma.vmem_to_hbm [thread:$0]  %s323, 64, %s321, %s307, 32, 32, 2
        $region44: #{tpu_custom_call.1} parent=27 // pred_fallthru
          _
      $region28: #{tpu_custom_call.1} parent=5 // pred_fallthru
        _
      %p329 = scmp.le.s32.totalorder 2, %s17
      // Predicated region
      $region45: #{tpu_custom_call.1} parent=5 // pred_check
        %p330 = pneg %p329
      $region46: #{tpu_custom_call.1} parent=5 // pred_check_branch
        %332 = sbr.rel (%p330) target = $region48
      $region47: #{tpu_custom_call.1} parent=5 // pred_region
        %s333 = ssub.s32 %s17, 2
        // Predicated region
        $region49: #{tpu_custom_call.1} parent=47 // pred_check
          %p334 = pneg %p127
        $region50: #{tpu_custom_call.1} parent=47 // pred_check_branch
          %336 = sbr.rel (%p334) target = $region52
        $region51: #{tpu_custom_call.1} parent=47 // pred_region
          %s337 = sand.u32 %s112, 1
          %s338 = scalar_lea.sflag [#allocation4], %s337
          %s339 = sand.u32 %s112, 1
          %s340 = smul.addr %s339, 4
          %s341 = scalar_lea.vmem [#allocation7], %s340
          %342 = dma.done %s338, 64
        $region52: #{tpu_custom_call.1} parent=47 // pred_fallthru
          _
      $region48: #{tpu_custom_call.1} parent=5 // pred_fallthru
        _
    $region6: #{tpu_custom_call.1} parent=1 // loop_footer
      %s21 = sadd.s32 1, %s17
    $region7: #{tpu_custom_call.1} parent=1 // loop_footer_branch
      %16 = sbr.rel target = $region3
    $region8: #{tpu_custom_call.1} parent=1 // loop_exit
      _
    %343 = vsyncpa [#allocation3], 1
    %s344 = scalar_lea.sflag [#allocation3], 1
    %345 = vsyncpa %s344, 1
    %346 = vsyncpa [#allocation6], 1
    %s347 = scalar_lea.sflag [#allocation6], 1
    %348 = vsyncpa %s347, 1
    %349 = vsyncpa [#allocation4], 1
    %s350 = scalar_lea.sflag [#allocation4], 1
    %351 = vsyncpa %s350, 1

</llo_original>
